<compile_context>
chip_gen: v6e
topology: v6e:2x2x1
jax: 0.10.0
libtpu: 0.0.40
codegen_flags: <defaults>
</compile_context>

<pallas_src>
import jax
import jax.numpy as jnp
from jax.experimental import pallas as pl
from jax.experimental.pallas import tpu as pltpu

LANE = 128     # lane width
SUB = 8        # sublanes per vreg
MAX_TM = 1024  # max rows per block: 1024*128*4B = 512 KiB/block (f32)


def _round_up(x, m):
    return ((x + m - 1) // m) * m


def _dice_kernel(i_ref, t_ref, o_ref, inter_acc, denom_acc):
    """Accumulate sum(i*t) and sum(i+t) into (8,128) vreg-shaped scratch."""
    step = pl.program_id(1)

    # Re-init accumulators at the start of each split's reduction sweep.
    @pl.when(step == 0)
    def _():
        inter_acc[...] = jnp.zeros_like(inter_acc)
        denom_acc[...] = jnp.zeros_like(denom_acc)

    i = i_ref[...].astype(jnp.float32)
    t = t_ref[...].astype(jnp.float32)
    tm = i.shape[0]

    # Collapse the tile along the row axis down to one (8,128) vreg each:
    # pure VPU adds, no cross-lane (XLU) work inside the loop.
    prod = jnp.sum((i * t).reshape(tm // SUB, SUB, LANE), axis=0)
    both = jnp.sum((i + t).reshape(tm // SUB, SUB, LANE), axis=0)
    inter_acc[...] += prod
    denom_acc[...] += both

    # Emit this split's partial accumulators on its last step (lane-dense
    # (8,128) stores; the final scalar reduce happens in the wrapper).
    @pl.when(step == pl.num_programs(1) - 1)
    def _():
        o_ref[0, 0, :, :] = inter_acc[...]
        o_ref[0, 1, :, :] = denom_acc[...]


def dice_loss(inp, target):
    """Pallas implementation of DiceLoss.forward(input, target)."""
    smooth = 1.0
    iflat = inp.reshape(-1)
    tflat = target.reshape(-1)
    n = iflat.shape[0]

    rows = -(-n // LANE)                      # ceil(n / 128)
    tm = min(MAX_TM, _round_up(rows, SUB))    # block rows (multiple of 8)
    nsplit = 2 if rows >= 2 * tm else 1       # feed both TCs when big enough
    rows_padded = _round_up(rows, nsplit * tm)

    pad = rows_padded * LANE - n
    if pad:  # zero padding is sum-neutral for both accumulators
        iflat = jnp.pad(iflat, (0, pad))
        tflat = jnp.pad(tflat, (0, pad))

    i2 = iflat.reshape(rows_padded, LANE)
    t2 = tflat.reshape(rows_padded, LANE)
    steps = rows_padded // (nsplit * tm)
    grid = (nsplit, steps)

    bytes_accessed = (
        i2.size * i2.dtype.itemsize
        + t2.size * t2.dtype.itemsize
        + nsplit * 2 * SUB * LANE * 4
    )

    partials = pl.pallas_call(
        _dice_kernel,
        out_shape=jax.ShapeDtypeStruct((nsplit, 2, SUB, LANE), jnp.float32),
        grid_spec=pltpu.PrefetchScalarGridSpec(
            num_scalar_prefetch=0,
            grid=grid,
            in_specs=[
                pl.BlockSpec((tm, LANE), lambda s, i: (s * steps + i, 0)),
                pl.BlockSpec((tm, LANE), lambda s, i: (s * steps + i, 0)),
            ],
            out_specs=pl.BlockSpec((1, 2, SUB, LANE), lambda s, i: (s, 0, 0, 0)),
            scratch_shapes=[
                pltpu.VMEM((SUB, LANE), jnp.float32),  # sum(i*t) accumulator
                pltpu.VMEM((SUB, LANE), jnp.float32),  # sum(i+t) accumulator
            ],
        ),
        compiler_params=pltpu.CompilerParams(
            dimension_semantics=("parallel", "arbitrary"),
        ),
        cost_estimate=pl.CostEstimate(
            flops=3 * n, transcendentals=0, bytes_accessed=bytes_accessed
        ),
    )(i2, t2)

    # Tiny epilogue: one cross-lane reduce over (nsplit, 8, 128) partials.
    intersection = jnp.sum(partials[:, 0])
    denom = jnp.sum(partials[:, 1])
    return 1.0 - (2.0 * intersection + smooth) / (denom + smooth)


def dice_loss_ref(inp, target):
    smooth = 1.0
    iflat = inp.reshape(-1).astype(jnp.float32)
    tflat = target.reshape(-1).astype(jnp.float32)
    intersection = jnp.sum(iflat * tflat)
    return 1.0 - (2.0 * intersection + smooth) / (
        jnp.sum(iflat) + jnp.sum(tflat) + smooth
    )


if __name__ == "__main__":
    key = jax.random.PRNGKey(0)
    k1, k2 = jax.random.split(key)

    # Typical UNet-head shapes: predicted probabilities vs binary mask, NCHW.
    B, C, H, W = 2, 4, 16, 16
    logits = jax.random.normal(k1, (B, C, H, W), dtype=jnp.float32)
    pred = jax.nn.sigmoid(logits)
    target = (jax.random.uniform(k2, (B, C, H, W)) > 0.5).astype(jnp.float32)

    loss = jax.block_until_ready(dice_loss(pred, target))
    ref = jax.block_until_ready(dice_loss_ref(pred, target))
    assert jnp.allclose(loss, ref, rtol=1e-5, atol=1e-6), (loss, ref)

    # Also exercise a larger, non-multiple size that triggers padding,
    # the big-tile path and the 2-way parallel split.
    k3, k4 = jax.random.split(k2)
    big_pred = jax.nn.sigmoid(jax.random.normal(k3, (3, 1, 300, 257), jnp.float32))
    big_tgt = (jax.random.uniform(k4, (3, 1, 300, 257)) > 0.5).astype(jnp.float32)
    big_loss = jax.block_until_ready(dice_loss(big_pred, big_tgt))
    big_ref = jax.block_until_ready(dice_loss_ref(big_pred, big_tgt))
    assert jnp.allclose(big_loss, big_ref, rtol=1e-5, atol=1e-6), (big_loss, big_ref)

    print("KERNEL_OK")
</pallas_src>

<mosaic_0001>
module attributes {stable_mosaic.version = 11 : i64} {
  func.func @_dice_kernel(%arg0: i32, %arg1: i32, %arg2: memref<16x128xf32, #tpu.memory_space<vmem>>, %arg3: memref<16x128xf32, #tpu.memory_space<vmem>>, %arg4: memref<1x2x8x128xf32, #tpu.memory_space<vmem>>, %arg5: memref<8x128xf32, #tpu.memory_space<vmem>>, %arg6: memref<8x128xf32, #tpu.memory_space<vmem>>) attributes {dimension_semantics = [#tpu.dimension_semantics<parallel>, #tpu.dimension_semantics<arbitrary>], iteration_bounds = array<i64: 1, 1>, scalar_prefetch = 0 : i64, scratch_operands = 2 : i64, tpu.core_type = #tpu.core_type<tc>, window_params = [{transform_indices = @transform_0, window_bounds = array<i64: 16, 128>}, {transform_indices = @transform_1, window_bounds = array<i64: 16, 128>}, {transform_indices = @transform_2, window_bounds = array<i64: 1, 2, 8, 128>}]} {
    %c0_i32 = arith.constant 0 : i32
    %0 = arith.cmpi eq, %arg1, %c0_i32 : i32
    %1 = arith.extui %0 : i1 to i32
    %c0_i32_0 = arith.constant 0 : i32
    %2 = arith.cmpi ne, %1, %c0_i32_0 : i32
    scf.if %2 {
      %cst_15 = arith.constant 0.000000e+00 : f32
      %20 = vector.broadcast %cst_15 : f32 to vector<8x128xf32>
      %c0_16 = arith.constant 0 : index
      %c0_17 = arith.constant 0 : index
      %21 = vector.load %arg5[%c0_16, %c0_17] : memref<8x128xf32, #tpu.memory_space<vmem>>, vector<8x128xf32>
      tpu.vector_store %arg5[%c0_16, %c0_17], %20 {strides = array<i32>} : memref<8x128xf32, #tpu.memory_space<vmem>>, vector<8x128xf32>,
      %cst_18 = arith.constant 0.000000e+00 : f32
      %22 = vector.broadcast %cst_18 : f32 to vector<8x128xf32>
      %c0_19 = arith.constant 0 : index
      %c0_20 = arith.constant 0 : index
      %23 = vector.load %arg6[%c0_19, %c0_20] : memref<8x128xf32, #tpu.memory_space<vmem>>, vector<8x128xf32>
      tpu.vector_store %arg6[%c0_19, %c0_20], %22 {strides = array<i32>} : memref<8x128xf32, #tpu.memory_space<vmem>>, vector<8x128xf32>,
    } else {
    }
    %c0 = arith.constant 0 : index
    %c0_1 = arith.constant 0 : index
    %3 = vector.load %arg2[%c0, %c0_1] : memref<16x128xf32, #tpu.memory_space<vmem>>, vector<16x128xf32>
    %c0_2 = arith.constant 0 : index
    %c0_3 = arith.constant 0 : index
    %4 = vector.load %arg3[%c0_2, %c0_3] : memref<16x128xf32, #tpu.memory_space<vmem>>, vector<16x128xf32>
    %5 = arith.mulf %3, %4 : vector<16x128xf32>
    %6 = vector.shape_cast %5 : vector<16x128xf32> to vector<2x8x128xf32>
    %cst = arith.constant dense<0.000000e+00> : vector<8x128xf32>
    %7 = vector.multi_reduction <add>, %6, %cst [0] : vector<2x8x128xf32> to vector<8x128xf32>
    %8 = arith.addf %3, %4 : vector<16x128xf32>
    %9 = vector.shape_cast %8 : vector<16x128xf32> to vector<2x8x128xf32>
    %cst_4 = arith.constant dense<0.000000e+00> : vector<8x128xf32>
    %10 = vector.multi_reduction <add>, %9, %cst_4 [0] : vector<2x8x128xf32> to vector<8x128xf32>
    %c0_5 = arith.constant 0 : index
    %c0_6 = arith.constant 0 : index
    %11 = vector.load %arg5[%c0_5, %c0_6] : memref<8x128xf32, #tpu.memory_space<vmem>>, vector<8x128xf32>
    %12 = arith.addf %11, %7 : vector<8x128xf32>
    %c0_7 = arith.constant 0 : index
    %c0_8 = arith.constant 0 : index
    %13 = vector.load %arg5[%c0_7, %c0_8] : memref<8x128xf32, #tpu.memory_space<vmem>>, vector<8x128xf32>
    tpu.vector_store %arg5[%c0_7, %c0_8], %12 {strides = array<i32>} : memref<8x128xf32, #tpu.memory_space<vmem>>, vector<8x128xf32>,
    %c0_9 = arith.constant 0 : index
    %c0_10 = arith.constant 0 : index
    %14 = vector.load %arg6[%c0_9, %c0_10] : memref<8x128xf32, #tpu.memory_space<vmem>>, vector<8x128xf32>
    %15 = arith.addf %14, %10 : vector<8x128xf32>
    %c0_11 = arith.constant 0 : index
    %c0_12 = arith.constant 0 : index
    %16 = vector.load %arg6[%c0_11, %c0_12] : memref<8x128xf32, #tpu.memory_space<vmem>>, vector<8x128xf32>
    tpu.vector_store %arg6[%c0_11, %c0_12], %15 {strides = array<i32>} : memref<8x128xf32, #tpu.memory_space<vmem>>, vector<8x128xf32>,
    %c0_i32_13 = arith.constant 0 : i32
    %17 = arith.cmpi eq, %arg1, %c0_i32_13 : i32
    %18 = arith.extui %17 : i1 to i32
    %c0_i32_14 = arith.constant 0 : i32
    %19 = arith.cmpi ne, %18, %c0_i32_14 : i32
    scf.if %19 {
      %c0_15 = arith.constant 0 : index
      %c0_16 = arith.constant 0 : index
      %20 = vector.load %arg5[%c0_15, %c0_16] : memref<8x128xf32, #tpu.memory_space<vmem>>, vector<8x128xf32>
      %c0_17 = arith.constant 0 : index
      %c0_18 = arith.constant 0 : index
      %c0_19 = arith.constant 0 : index
      %c0_20 = arith.constant 0 : index
      %21 = vector.load %arg4[%c0_17, %c0_18, %c0_19, %c0_20] : memref<1x2x8x128xf32, #tpu.memory_space<vmem>>, vector<1x1x8x128xf32>
      %22 = vector.shape_cast %21 : vector<1x1x8x128xf32> to vector<8x128xf32>
      %23 = vector.shape_cast %20 : vector<8x128xf32> to vector<1x1x8x128xf32>
      tpu.vector_store %arg4[%c0_17, %c0_18, %c0_19, %c0_20], %23 {strides = array<i32>} : memref<1x2x8x128xf32, #tpu.memory_space<vmem>>, vector<1x1x8x128xf32>,
      %c0_21 = arith.constant 0 : index
      %c0_22 = arith.constant 0 : index
      %24 = vector.load %arg6[%c0_21, %c0_22] : memref<8x128xf32, #tpu.memory_space<vmem>>, vector<8x128xf32>
      %c0_23 = arith.constant 0 : index
      %c1 = arith.constant 1 : index
      %c0_24 = arith.constant 0 : index
      %c0_25 = arith.constant 0 : index
      %25 = vector.load %arg4[%c0_23, %c1, %c0_24, %c0_25] : memref<1x2x8x128xf32, #tpu.memory_space<vmem>>, vector<1x1x8x128xf32>
      %26 = vector.shape_cast %25 : vector<1x1x8x128xf32> to vector<8x128xf32>
      %27 = vector.shape_cast %24 : vector<8x128xf32> to vector<1x1x8x128xf32>
      tpu.vector_store %arg4[%c0_23, %c1, %c0_24, %c0_25], %27 {strides = array<i32>} : memref<1x2x8x128xf32, #tpu.memory_space<vmem>>, vector<1x1x8x128xf32>,
    } else {
    }
    return
  }
  func.func @transform_0(%arg0: i32, %arg1: i32) -> (i32, i32) {
    %c1_i32 = arith.constant 1 : i32
    %0 = arith.muli %arg0, %c1_i32 : i32
    %1 = arith.addi %0, %arg1 : i32
    %c0_i32 = arith.constant 0 : i32
    %c0_i32_0 = arith.constant 0 : i32
    return %1, %c0_i32 : i32, i32
  }
  func.func @transform_1(%arg0: i32, %arg1: i32) -> (i32, i32) {
    %c1_i32 = arith.constant 1 : i32
    %0 = arith.muli %arg0, %c1_i32 : i32
    %1 = arith.addi %0, %arg1 : i32
    %c0_i32 = arith.constant 0 : i32
    %c0_i32_0 = arith.constant 0 : i32
    return %1, %c0_i32 : i32, i32
  }
  func.func @transform_2(%arg0: i32, %arg1: i32) -> (i32, i32, i32, i32) {
    %c0_i32 = arith.constant 0 : i32
    %c0_i32_0 = arith.constant 0 : i32
    %c0_i32_1 = arith.constant 0 : i32
    %c0_i32_2 = arith.constant 0 : i32
    return %arg0, %c0_i32, %c0_i32_0, %c0_i32_1 : i32, i32, i32, i32
  }
}

</mosaic_0001>

<llo_original>
// kernel: tpu_custom_call.1
$region0: #{tpu_custom_call.1}
  #allocation0 [shape = 'u32[]', space=smem, size = 0x4, offset = 0x4, fixed_abs, tag = 'smem constant byte address 0x4 - core index']
  #allocation1 [shape = 'u32[144,128]{1,0:T(1,128)}', space=vmem, size = 0x12000, scoped, tag = 'internal scratch']
  #allocation2 [shape = 'f32[8,128]{1,0:T(8,128)}', space=vmem, size = 0x1000, scoped, tag = 'scratch operand']
  #allocation3 [shape = 'f32[8,128]{1,0:T(8,128)}', space=vmem, size = 0x1000, scoped, tag = 'scratch operand']
  %s0 = inlined_call_operand.hbm [shape: f32[16,128], index: 0, kind: input, shape index: {}]
  %s1 = inlined_call_operand.hbm [shape: f32[16,128], index: 1, kind: input, shape index: {}]
  %s2 = inlined_call_operand.hbm [shape: f32[1,2,8,128], index: 2, kind: output, shape index: {}]
  %s3 = sld [smem:[#allocation0]]
  $region34: #{tpu_custom_call.1} parent=0
    _
  %s5 = ssub.s32 1, %s3
  %s6 = scalar_select 0, %s5, %s3
  $region1: #{tpu_custom_call.1} parent=0
    #allocation4 [shape = 'u8[8192]{0}', space=vmem, size = 0x2000, scoped, tag = 'input window, operand 0, single buffered']
    #allocation5 [shape = 's32[1]{0}', space=sflag, size = 0x4, scoped, tag = 'scoped memory for tpu_custom_call.1']
    #allocation6 [shape = 's32[1]{0}', space=sflag, size = 0x4, scoped, tag = 'scoped memory for tpu_custom_call.1']
    #allocation7 [shape = 'u8[8192]{0}', space=vmem, size = 0x2000, scoped, tag = 'input window, operand 1, single buffered']
    #allocation8 [shape = 's32[1]{0}', space=sflag, size = 0x4, scoped, tag = 'scoped memory for tpu_custom_call.1']
    #allocation9 [shape = 'u8[8192]{0}', space=vmem, size = 0x2000, scoped, tag = 'output window, operand 0, single buffered']
    %7 = vsyncpa [#allocation5], 0
    %8 = vsyncpa [#allocation8], 0
    %9 = vsyncpa [#allocation6], 0
    // Predicated region
    $region2: #{tpu_custom_call.1} parent=1 // pred_check
      _
    $region3: #{tpu_custom_call.1} parent=1 // pred_check_branch
      %11 = sbr.rel (0) target = $region5
    $region4: #{tpu_custom_call.1} parent=1 // pred_region
      %s12 = sadd.s32 0, 0
      %s13 = smul.u32 2, %s12
      %s15 = ssub.s32 256, 256
      %16 = vsyncadd [#allocation5], %s15
      %s17 = smul.addr %s13, 128
      %s18 = scalar_lea.hbm %s0, %s17
      %s19 = sshll.u32 [#allocation4], 4
      %s20 = int_to_ptr.vmem [resolvable:$true] %s19
      %25 = dma.hbm_to_vmem [thread:$0]  %s18, 256, %s20, [#allocation5], 128, 128, 8
    $region5: #{tpu_custom_call.1} parent=1 // pred_fallthru
      _
    // Predicated region
    $region6: #{tpu_custom_call.1} parent=1 // pred_check
      _
    $region7: #{tpu_custom_call.1} parent=1 // pred_check_branch
      %27 = sbr.rel (0) target = $region9
    $region8: #{tpu_custom_call.1} parent=1 // pred_region
      %s28 = sadd.s32 0, 0
      %s29 = smul.u32 2, %s28
      %s31 = ssub.s32 256, 256
      %32 = vsyncadd [#allocation8], %s31
      %s33 = smul.addr %s29, 128
      %s34 = scalar_lea.hbm %s1, %s33
      %s35 = sshll.u32 [#allocation7], 4
      %s36 = int_to_ptr.vmem [resolvable:$true] %s35
      %41 = dma.hbm_to_vmem [thread:$0]  %s34, 256, %s36, [#allocation8], 128, 128, 8
    $region9: #{tpu_custom_call.1} parent=1 // pred_fallthru
      _
    // Predicated region
    $region10: #{tpu_custom_call.1} parent=1 // pred_check
      _
    $region11: #{tpu_custom_call.1} parent=1 // pred_check_branch
      %43 = sbr.rel (0) target = $region13
    $region12: #{tpu_custom_call.1} parent=1 // pred_region
      %44 = dma.done [#allocation5], 256
    $region13: #{tpu_custom_call.1} parent=1 // pred_fallthru
      _
    // Predicated region
    $region14: #{tpu_custom_call.1} parent=1 // pred_check
      _
    $region15: #{tpu_custom_call.1} parent=1 // pred_check_branch
      %46 = sbr.rel (0) target = $region17
    $region16: #{tpu_custom_call.1} parent=1 // pred_region
      %47 = dma.done [#allocation8], 256
    $region17: #{tpu_custom_call.1} parent=1 // pred_fallthru
      _
    %s48 = sadd.s32 0, 0
    %s49 = smul.u32 2, %s48
    %s50 = sadd.s32 0, 0
    %s51 = smul.u32 2, %s50
    %p52 = scmp.eq.s32.totalorder 0, 0
    // Predicated region
    $region18: #{tpu_custom_call.1} parent=1 // pred_check
      %p53 = pneg %p52
    $region19: #{tpu_custom_call.1} parent=1 // pred_check_branch
      %55 = sbr.rel (%p53) target = $region21
    $region20: #{tpu_custom_call.1} parent=1 // pred_region
      %56 = vst [vmem:[#allocation2] sm:$0xff] 0.0
      %57 = vst [vmem:[#allocation3] sm:$0xff] 0.0
    $region21: #{tpu_custom_call.1} parent=1 // pred_fallthru
      _
    %v58 = vld [vmem:[#allocation4] sm:$0xff]
    %v59 = vld [vmem:[#allocation4 + $0x8] sm:$0xff]
    %v60 = vld [vmem:[#allocation7] sm:$0xff]
    %v61 = vld [vmem:[#allocation7 + $0x8] sm:$0xff]
    %v62 = vmul.f32 %v58, %v60
    %v63 = vmul.f32 %v59, %v61
    %v64 = vadd.f32 %v62, %v63
    %v65 = vadd.f32 %v58, %v60
    %v66 = vadd.f32 %v59, %v61
    %v67 = vadd.f32 %v65, %v66
    %v68 = vld [vmem:[#allocation2] sm:$0xff]
    %v69 = vadd.f32 %v68, %v64
    %70 = vst [vmem:[#allocation2] sm:$0xff] %v69
    %v71 = vld [vmem:[#allocation3] sm:$0xff]
    %v72 = vadd.f32 %v71, %v67
    %73 = vst [vmem:[#allocation3] sm:$0xff] %v72
    // Predicated region
    $region22: #{tpu_custom_call.1} parent=1 // pred_check
      %p74 = pneg %p52
    $region23: #{tpu_custom_call.1} parent=1 // pred_check_branch
      %76 = sbr.rel (%p74) target = $region25
    $region24: #{tpu_custom_call.1} parent=1 // pred_region
      %v77 = vld [vmem:[#allocation2] sm:$0xff]
      %78 = vst [vmem:[#allocation9] sm:$0xff] %v77
      %v79 = vld [vmem:[#allocation3] sm:$0xff]
      %s80 = scalar_lea.vmem [#allocation9], 8
      %81 = vst [vmem:[%s80] sm:$0xff] %v79
    $region25: #{tpu_custom_call.1} parent=1 // pred_fallthru
      _
    // Predicated region
    $region26: #{tpu_custom_call.1} parent=1 // pred_check
      _
    $region27: #{tpu_custom_call.1} parent=1 // pred_check_branch
      %83 = sbr.rel (0) target = $region29
    $region28: #{tpu_custom_call.1} parent=1 // pred_region
      %s85 = ssub.s32 256, 256
      %86 = vsyncadd [#allocation6], %s85
      %s87 = sshll.u32 [#allocation9], 4
      %s88 = int_to_ptr.vmem [resolvable:$true] %s87
      %93 = dma.vmem_to_hbm [thread:$0]  %s88, 256, %s2, [#allocation6], 128, 128, 8
    $region29: #{tpu_custom_call.1} parent=1 // pred_fallthru
      _
    // Predicated region
    $region30: #{tpu_custom_call.1} parent=1 // pred_check
      _
    $region31: #{tpu_custom_call.1} parent=1 // pred_check_branch
      %95 = sbr.rel (0) target = $region33
    $region32: #{tpu_custom_call.1} parent=1 // pred_region
      %96 = dma.done [#allocation6], 256
    $region33: #{tpu_custom_call.1} parent=1 // pred_fallthru
      _
    %97 = vsyncpa [#allocation5], 1
    %98 = vsyncpa [#allocation8], 1
    %99 = vsyncpa [#allocation6], 1

</llo_original>
